<compile_context>
chip_gen: v7x
topology: tpu7x:2x2x1
jax: 0.10.0
libtpu: 0.0.40
codegen_flags: <defaults>
</compile_context>

<pallas_src>
import functools

import jax
import jax.numpy as jnp
from jax.experimental import pallas as pl
from jax.experimental.pallas import tpu as pltpu


def _bn_train_kernel(x_ref, lg_ref, beta_ref, rm_ref, rv_ref,
                     y_ref, ld_ref, nrm_ref, nrv_ref,
                     *, momentum, eps):
    n = x_ref.shape[0]
    # Statistics in f32 regardless of the storage dtype of x/y.
    xf = x_ref[...].astype(jnp.float32)                       # (N, TILE_D)

    # Fused single sweep over the slab: sum(x) and sum(x*x) together.
    sum_x = jnp.sum(xf, axis=0, keepdims=True)                 # (1, TILE_D)
    sum_xx = jnp.sum(xf * xf, axis=0, keepdims=True)           # (1, TILE_D)
    mean = sum_x * jnp.float32(1.0 / n)
    # Unbiased variance (ddof=1), E[x^2] - mean^2 form; clamp tiny negative
    # cancellation residue so rsqrt/log stay finite.
    var = (sum_xx - jnp.float32(n) * mean * mean) * jnp.float32(1.0 / (n - 1))
    var = jnp.maximum(var, 0.0)

    inv_std = jax.lax.rsqrt(var + eps)                         # (1, TILE_D)
    gamma = jnp.exp(lg_ref[...])                               # (1, TILE_D)
    scale = gamma * inv_std                                    # (1, TILE_D)
    shift = beta_ref[...] - mean * scale                       # (1, TILE_D)

    # Normalize + affine in one FMA-style pass over the f32 slab.
    # TODO(synk): on v6e/v7x a bf16 normalize path (stats in f32) would halve
    # vreg/VMEM pressure of this pass; kept f32 for v5e portability.
    y_ref[...] = (xf * scale + shift).astype(y_ref.dtype)

    # Per-feature log|det J| row; the (N, D) expand (if wanted) is done by
    # the caller, not materialized in the kernel.
    ld_ref[...] = lg_ref[...] - 0.5 * jnp.log(var + eps)

    # Running-buffer updates (RealNVP convention: new = m*old + (1-m)*batch).
    nrm_ref[...] = momentum * rm_ref[...] + (1.0 - momentum) * mean
    nrv_ref[...] = momentum * rv_ref[...] + (1.0 - momentum) * var


def _round_up(v, m):
    return ((v + m - 1) // m) * m


def _plain_jax_forward(x, lg, bt, rm, rv, momentum, eps):
    """Reference / fallback path (tiny problems, or slabs too big for VMEM)."""
    xf = x.astype(jnp.float32)
    mean = jnp.mean(xf, axis=0)
    var = jnp.var(xf, axis=0, ddof=1)
    inv_std = jax.lax.rsqrt(var + eps)
    y = (jnp.exp(lg) * ((xf - mean) * inv_std) + bt).astype(x.dtype)
    ld_row = lg - 0.5 * jnp.log(var + eps)
    nrm = momentum * rm + (1.0 - momentum) * mean
    nrv = momentum * rv + (1.0 - momentum) * var
    return y, ld_row, nrm, nrv


def batchnorm_forward(x, log_gamma, beta, running_mean, running_var,
                      momentum=0.9, eps=1e-5, *,
                      expand_logdet=True,
                      min_elements_for_pallas=1 << 20):
    """Training-mode RealNVP BatchNorm forward (Pallas TPU).

    x: (N, D); log_gamma/beta/running_mean/running_var: (D,).
    Returns (y, log_abs_det_jacobian, new_running_mean, new_running_var).
    log_abs_det_jacobian is (N, D) if expand_logdet else (D,).
    """
    N, D = x.shape
    if N < 2:
        raise ValueError("Training-mode BatchNorm needs N >= 2 (unbiased variance).")

    lg1 = jnp.asarray(log_gamma, jnp.float32).reshape(D)
    bt1 = jnp.asarray(beta, jnp.float32).reshape(D)
    rm1 = jnp.asarray(running_mean, jnp.float32).reshape(D)
    rv1 = jnp.asarray(running_var, jnp.float32).reshape(D)
    momentum = float(momentum)
    eps = float(eps)

    # --- VMEM sizing (per generation) -------------------------------------
    itemsize = jnp.dtype(x.dtype).itemsize
    try:
        phys_vmem = int(pltpu.get_tpu_info().vmem_capacity_bytes)
    except Exception:
        phys_vmem = 64 * 1024 * 1024  # conservative (v7x per-TC)
    # ~64 MiB budget on 128 MiB parts (v5e/v6e), ~40 MiB on 64 MiB parts (v7x).
    vmem_budget = min(64 * 1024 * 1024, (phys_vmem * 5) // 8)

    # Per-step working set, per lane column:
    #   x tile (double-buffered)  : 2 * N * itemsize
    #   y tile (double-buffered)  : 2 * N * itemsize
    #   f32 temps (x_f32 + pre-cast y result), not double-buffered: 2 * N * 4
    # plus ~16 small (1, tile_d) f32 rows (params / stats / outputs).
    bytes_per_col = N * (4 * itemsize + 8) + 16 * 4

    n_lane_blocks = pl.cdiv(D, 128)
    tile_cap_cols = (vmem_budget // bytes_per_col) // 128 * 128

    use_pallas = (N * D) >= min_elements_for_pallas
    if tile_cap_cols < 128:
        # Even an (N, 128) slab (plus f32 temps) exceeds the VMEM budget.
        # TODO(synk): two-pass sum/sum-of-squares accumulation over an
        # "arbitrary" N grid axis for very large batches; fall back for now.
        use_pallas = False

    if not use_pallas:
        y, ld_row, nrm, nrv = _plain_jax_forward(x, lg1, bt1, rm1, rv1,
                                                 momentum, eps)
    else:
        # Biggest lane-dense tile that fits the budget, but guarantee >= 2
        # grid steps when D permits so "parallel" can shard across the two
        # v7x TensorCores (harmless extra ~0.35us step on single-TC parts).
        tile_d = min(int(tile_cap_cols), 8192, n_lane_blocks * 128)
        if n_lane_blocks >= 2:
            tile_d = min(tile_d, ((n_lane_blocks + 1) // 2) * 128)
        tile_d = max(tile_d, 128)
        grid = (pl.cdiv(D, tile_d),)

        working_set = tile_d * bytes_per_col
        vmem_limit = int(min(phys_vmem, working_set + 16 * 1024 * 1024))

        lg = lg1.reshape(1, D)
        bt = bt1.reshape(1, D)
        rm = rm1.reshape(1, D)
        rv = rv1.reshape(1, D)

        kernel = functools.partial(_bn_train_kernel, momentum=momentum, eps=eps)

        x_spec = pl.BlockSpec((N, tile_d), lambda j: (0, j))
        p_spec = pl.BlockSpec((1, tile_d), lambda j: (0, j))

        y, ld2, nrm2, nrv2 = pl.pallas_call(
            kernel,
            grid=grid,
            out_shape=(
                jax.ShapeDtypeStruct((N, D), x.dtype),       # y (native dtype)
                jax.ShapeDtypeStruct((1, D), jnp.float32),   # log-det row
                jax.ShapeDtypeStruct((1, D), jnp.float32),   # new running_mean
                jax.ShapeDtypeStruct((1, D), jnp.float32),   # new running_var
            ),
            in_specs=[x_spec, p_spec, p_spec, p_spec, p_spec],
            out_specs=(x_spec, p_spec, p_spec, p_spec),
            compiler_params=pltpu.CompilerParams(
                dimension_semantics=("parallel",),
                vmem_limit_bytes=vmem_limit),
        )(x, lg, bt, rm, rv)
        ld_row, nrm, nrv = ld2[0], nrm2[0], nrv2[0]

    if expand_logdet:
        log_abs_det = jnp.broadcast_to(ld_row, (N, D))
    else:
        log_abs_det = ld_row
    return y, log_abs_det, nrm, nrv


def _check_case(key, N, D):
    x = jax.random.normal(key, (N, D), dtype=jnp.float32)

    # Deterministic parameter init, matching nn.Parameter / buffer init.
    log_gamma = jnp.zeros((D,), dtype=jnp.float32)
    beta = jnp.zeros((D,), dtype=jnp.float32)
    running_mean = jnp.zeros((D,), dtype=jnp.float32)
    running_var = jnp.ones((D,), dtype=jnp.float32)

    y, logdet, new_rm, new_rv = batchnorm_forward(
        x, log_gamma, beta, running_mean, running_var,
        momentum=0.9, eps=1e-5,
        min_elements_for_pallas=0)   # force the Pallas path for the test
    jax.block_until_ready((y, logdet, new_rm, new_rv))

    # Pure-JAX reference (training path, unbiased variance).
    mean_ref = x.mean(0)
    var_ref = x.var(0, ddof=1)
    xhat_ref = (x - mean_ref) / jnp.sqrt(var_ref + 1e-5)
    y_ref = jnp.exp(log_gamma) * xhat_ref + beta
    ld_ref = jnp.broadcast_to(log_gamma - 0.5 * jnp.log(var_ref + 1e-5), x.shape)
    rm_ref = 0.9 * running_mean + 0.1 * mean_ref
    rv_ref = 0.9 * running_var + 0.1 * var_ref

    assert y.shape == (N, D) and logdet.shape == (N, D)
    assert jnp.allclose(y, y_ref, atol=1e-5, rtol=1e-5)
    assert jnp.allclose(logdet, ld_ref, atol=1e-5, rtol=1e-5)
    assert jnp.allclose(new_rm, rm_ref, atol=1e-5, rtol=1e-5)
    assert jnp.allclose(new_rv, rv_ref, atol=1e-5, rtol=1e-5)


if __name__ == "__main__":
    key = jax.random.PRNGKey(0)
    k1, k2 = jax.random.split(key)

    # Original module-sized case: batch of 8 vectors, input_size = 32.
    _check_case(k1, N=8, D=32)
    # Ragged feature axis (D % 128 != 0, 2 grid steps, partial last block).
    _check_case(k2, N=16, D=200)

    print("KERNEL_OK")
</pallas_src>

<mosaic_0001>
module attributes {stable_mosaic.version = 11 : i64} {
  func.func @_bn_train_kernel(%arg0: i32, %arg1: memref<8x128xf32, #tpu.memory_space<vmem>>, %arg2: memref<1x128xf32, #tpu.memory_space<vmem>>, %arg3: memref<1x128xf32, #tpu.memory_space<vmem>>, %arg4: memref<1x128xf32, #tpu.memory_space<vmem>>, %arg5: memref<1x128xf32, #tpu.memory_space<vmem>>, %arg6: memref<8x128xf32, #tpu.memory_space<vmem>>, %arg7: memref<1x128xf32, #tpu.memory_space<vmem>>, %arg8: memref<1x128xf32, #tpu.memory_space<vmem>>, %arg9: memref<1x128xf32, #tpu.memory_space<vmem>>) attributes {dimension_semantics = [#tpu.dimension_semantics<parallel>], iteration_bounds = array<i64: 1>, scalar_prefetch = 0 : i64, scratch_operands = 0 : i64, tpu.core_type = #tpu.core_type<tc>, window_params = [{transform_indices = @transform_0, window_bounds = array<i64: 8, 128>}, {transform_indices = @transform_1, window_bounds = array<i64: 1, 128>}, {transform_indices = @transform_2, window_bounds = array<i64: 1, 128>}, {transform_indices = @transform_3, window_bounds = array<i64: 1, 128>}, {transform_indices = @transform_4, window_bounds = array<i64: 1, 128>}, {transform_indices = @transform_5, window_bounds = array<i64: 8, 128>}, {transform_indices = @transform_6, window_bounds = array<i64: 1, 128>}, {transform_indices = @transform_7, window_bounds = array<i64: 1, 128>}, {transform_indices = @transform_8, window_bounds = array<i64: 1, 128>}]} {
    %c0 = arith.constant 0 : index
    %c0_0 = arith.constant 0 : index
    %0 = vector.load %arg1[%c0, %c0_0] : memref<8x128xf32, #tpu.memory_space<vmem>>, vector<8x128xf32>
    %cst = arith.constant dense<0.000000e+00> : vector<128xf32>
    %1 = vector.multi_reduction <add>, %0, %cst [0] : vector<8x128xf32> to vector<128xf32>
    %2 = vector.shape_cast %1 : vector<128xf32> to vector<1x128xf32>
    %3 = arith.mulf %0, %0 : vector<8x128xf32>
    %cst_1 = arith.constant dense<0.000000e+00> : vector<128xf32>
    %4 = vector.multi_reduction <add>, %3, %cst_1 [0] : vector<8x128xf32> to vector<128xf32>
    %5 = vector.shape_cast %4 : vector<128xf32> to vector<1x128xf32>
    %cst_2 = arith.constant 1.250000e-01 : f32
    %6 = vector.broadcast %cst_2 : f32 to vector<1x128xf32>
    %7 = arith.mulf %2, %6 : vector<1x128xf32>
    %cst_3 = arith.constant 8.000000e+00 : f32
    %8 = vector.broadcast %cst_3 : f32 to vector<1x128xf32>
    %9 = arith.mulf %8, %7 : vector<1x128xf32>
    %10 = arith.mulf %9, %7 : vector<1x128xf32>
    %11 = arith.subf %5, %10 : vector<1x128xf32>
    %cst_4 = arith.constant 0.142857149 : f32
    %12 = vector.broadcast %cst_4 : f32 to vector<1x128xf32>
    %13 = arith.mulf %11, %12 : vector<1x128xf32>
    %cst_5 = arith.constant 0.000000e+00 : f32
    %14 = vector.broadcast %cst_5 : f32 to vector<1x128xf32>
    %15 = arith.maximumf %13, %14 : vector<1x128xf32>
    %cst_6 = arith.constant 9.99999974E-6 : f32
    %16 = vector.broadcast %cst_6 : f32 to vector<1x128xf32>
    %17 = arith.addf %15, %16 : vector<1x128xf32>
    %18 = math.rsqrt %17 : vector<1x128xf32>
    %c0_7 = arith.constant 0 : index
    %c0_8 = arith.constant 0 : index
    %19 = vector.load %arg2[%c0_7, %c0_8] : memref<1x128xf32, #tpu.memory_space<vmem>>, vector<1x128xf32>
    %20 = math.exp %19 : vector<1x128xf32>
    %21 = arith.mulf %20, %18 : vector<1x128xf32>
    %c0_9 = arith.constant 0 : index
    %c0_10 = arith.constant 0 : index
    %22 = vector.load %arg3[%c0_9, %c0_10] : memref<1x128xf32, #tpu.memory_space<vmem>>, vector<1x128xf32>
    %23 = arith.mulf %7, %21 : vector<1x128xf32>
    %24 = arith.subf %22, %23 : vector<1x128xf32>
    %25 = vector.broadcast %21 : vector<1x128xf32> to vector<8x128xf32>
    %26 = arith.mulf %0, %25 : vector<8x128xf32>
    %27 = vector.broadcast %24 : vector<1x128xf32> to vector<8x128xf32>
    %28 = arith.addf %26, %27 : vector<8x128xf32>
    %c0_11 = arith.constant 0 : index
    %c0_12 = arith.constant 0 : index
    %29 = vector.load %arg6[%c0_11, %c0_12] : memref<8x128xf32, #tpu.memory_space<vmem>>, vector<8x128xf32>
    tpu.vector_store %arg6[%c0_11, %c0_12], %28 {strides = array<i32>} : memref<8x128xf32, #tpu.memory_space<vmem>>, vector<8x128xf32>,
    %c0_13 = arith.constant 0 : index
    %c0_14 = arith.constant 0 : index
    %30 = vector.load %arg2[%c0_13, %c0_14] : memref<1x128xf32, #tpu.memory_space<vmem>>, vector<1x128xf32>
    %cst_15 = arith.constant 9.99999974E-6 : f32
    %31 = vector.broadcast %cst_15 : f32 to vector<1x128xf32>
    %32 = arith.addf %15, %31 : vector<1x128xf32>
    %33 = math.log %32 : vector<1x128xf32>
    %cst_16 = arith.constant 5.000000e-01 : f32
    %34 = vector.broadcast %cst_16 : f32 to vector<1x128xf32>
    %35 = arith.mulf %34, %33 : vector<1x128xf32>
    %36 = arith.subf %30, %35 : vector<1x128xf32>
    %c0_17 = arith.constant 0 : index
    %c0_18 = arith.constant 0 : index
    %37 = vector.load %arg7[%c0_17, %c0_18] : memref<1x128xf32, #tpu.memory_space<vmem>>, vector<1x128xf32>
    tpu.vector_store %arg7[%c0_17, %c0_18], %36 {strides = array<i32>} : memref<1x128xf32, #tpu.memory_space<vmem>>, vector<1x128xf32>,
    %c0_19 = arith.constant 0 : index
    %c0_20 = arith.constant 0 : index
    %38 = vector.load %arg4[%c0_19, %c0_20] : memref<1x128xf32, #tpu.memory_space<vmem>>, vector<1x128xf32>
    %cst_21 = arith.constant 0.899999976 : f32
    %39 = vector.broadcast %cst_21 : f32 to vector<1x128xf32>
    %40 = arith.mulf %39, %38 : vector<1x128xf32>
    %cst_22 = arith.constant 1.000000e-01 : f32
    %41 = vector.broadcast %cst_22 : f32 to vector<1x128xf32>
    %42 = arith.mulf %41, %7 : vector<1x128xf32>
    %43 = arith.addf %40, %42 : vector<1x128xf32>
    %c0_23 = arith.constant 0 : index
    %c0_24 = arith.constant 0 : index
    %44 = vector.load %arg8[%c0_23, %c0_24] : memref<1x128xf32, #tpu.memory_space<vmem>>, vector<1x128xf32>
    tpu.vector_store %arg8[%c0_23, %c0_24], %43 {strides = array<i32>} : memref<1x128xf32, #tpu.memory_space<vmem>>, vector<1x128xf32>,
    %c0_25 = arith.constant 0 : index
    %c0_26 = arith.constant 0 : index
    %45 = vector.load %arg5[%c0_25, %c0_26] : memref<1x128xf32, #tpu.memory_space<vmem>>, vector<1x128xf32>
    %cst_27 = arith.constant 0.899999976 : f32
    %46 = vector.broadcast %cst_27 : f32 to vector<1x128xf32>
    %47 = arith.mulf %46, %45 : vector<1x128xf32>
    %cst_28 = arith.constant 1.000000e-01 : f32
    %48 = vector.broadcast %cst_28 : f32 to vector<1x128xf32>
    %49 = arith.mulf %48, %15 : vector<1x128xf32>
    %50 = arith.addf %47, %49 : vector<1x128xf32>
    %c0_29 = arith.constant 0 : index
    %c0_30 = arith.constant 0 : index
    %51 = vector.load %arg9[%c0_29, %c0_30] : memref<1x128xf32, #tpu.memory_space<vmem>>, vector<1x128xf32>
    tpu.vector_store %arg9[%c0_29, %c0_30], %50 {strides = array<i32>} : memref<1x128xf32, #tpu.memory_space<vmem>>, vector<1x128xf32>,
    return
  }
  func.func @transform_0(%arg0: i32) -> (i32, i32) {
    %c0_i32 = arith.constant 0 : i32
    %c0_i32_0 = arith.constant 0 : i32
    return %c0_i32, %arg0 : i32, i32
  }
  func.func @transform_1(%arg0: i32) -> (i32, i32) {
    %c0_i32 = arith.constant 0 : i32
    %c0_i32_0 = arith.constant 0 : i32
    return %c0_i32, %arg0 : i32, i32
  }
  func.func @transform_2(%arg0: i32) -> (i32, i32) {
    %c0_i32 = arith.constant 0 : i32
    %c0_i32_0 = arith.constant 0 : i32
    return %c0_i32, %arg0 : i32, i32
  }
  func.func @transform_3(%arg0: i32) -> (i32, i32) {
    %c0_i32 = arith.constant 0 : i32
    %c0_i32_0 = arith.constant 0 : i32
    return %c0_i32, %arg0 : i32, i32
  }
  func.func @transform_4(%arg0: i32) -> (i32, i32) {
    %c0_i32 = arith.constant 0 : i32
    %c0_i32_0 = arith.constant 0 : i32
    return %c0_i32, %arg0 : i32, i32
  }
  func.func @transform_5(%arg0: i32) -> (i32, i32) {
    %c0_i32 = arith.constant 0 : i32
    %c0_i32_0 = arith.constant 0 : i32
    return %c0_i32, %arg0 : i32, i32
  }
  func.func @transform_6(%arg0: i32) -> (i32, i32) {
    %c0_i32 = arith.constant 0 : i32
    %c0_i32_0 = arith.constant 0 : i32
    return %c0_i32, %arg0 : i32, i32
  }
  func.func @transform_7(%arg0: i32) -> (i32, i32) {
    %c0_i32 = arith.constant 0 : i32
    %c0_i32_0 = arith.constant 0 : i32
    return %c0_i32, %arg0 : i32, i32
  }
  func.func @transform_8(%arg0: i32) -> (i32, i32) {
    %c0_i32 = arith.constant 0 : i32
    %c0_i32_0 = arith.constant 0 : i32
    return %c0_i32, %arg0 : i32, i32
  }
}

</mosaic_0001>

<llo_original>
// kernel: tpu_custom_call.1
$region0: #{tpu_custom_call.1}
  #allocation0 [shape = 'u32[]', space=smem, size = 0x4, offset = 0x4, fixed_abs, tag = 'smem constant byte address 0x4 - core index']
  #allocation1 [shape = 'u32[144,128]{1,0:T(1,128)}', space=vmem, size = 0x12000, scoped, tag = 'internal scratch']
  %s0 = inlined_call_operand.hbm [shape: f32[8,32], index: 0, kind: input, shape index: {}]
  %s1 = inlined_call_operand.vmem [shape: f32[1,32], index: 1, kind: input, shape index: {}]
  %s2 = inlined_call_operand.vmem [shape: f32[1,32], index: 2, kind: input, shape index: {}]
  %s3 = inlined_call_operand.vmem [shape: f32[1,32], index: 3, kind: input, shape index: {}]
  %s4 = inlined_call_operand.vmem [shape: f32[1,32], index: 4, kind: input, shape index: {}]
  %s5 = inlined_call_operand.hbm [shape: f32[8,32], index: 5, kind: output, shape index: {0}]
  %s6 = inlined_call_operand.hbm [shape: f32[1,32], index: 6, kind: output, shape index: {1}]
  %s7 = inlined_call_operand.hbm [shape: f32[1,32], index: 7, kind: output, shape index: {2}]
  %s8 = inlined_call_operand.hbm [shape: f32[1,32], index: 8, kind: output, shape index: {3}]
  %9 = xla_tuple %s5, %s6, %s7, %s8
  %s10 = sld [smem:[#allocation0]]
  $region58: #{tpu_custom_call.1} parent=0
    _
  %s12 = ssub.s32 1, %s10
  %s13 = scalar_select 0, %s12, %s10
  $region1: #{tpu_custom_call.1} parent=0
    #allocation2 [shape = 'u8[4096]{0}', space=vmem, size = 0x1000, scoped, tag = 'input window, operand 0, single buffered']
    #allocation3 [shape = 's32[1]{0}', space=sflag, size = 0x4, scoped, tag = 'scoped memory for tpu_custom_call.1']
    #allocation4 [shape = 's32[1]{0}', space=sflag, size = 0x4, scoped, tag = 'scoped memory for tpu_custom_call.1']
    #allocation5 [shape = 'u8[4096]{0}', space=vmem, size = 0x1000, scoped, tag = 'output window, operand 0, single buffered']
    #allocation6 [shape = 'u8[512]{0}', space=vmem, size = 0x400, scoped, tag = 'output window, operand 1, single buffered']
    #allocation7 [shape = 's32[1]{0}', space=sflag, size = 0x4, scoped, tag = 'scoped memory for tpu_custom_call.1']
    #allocation8 [shape = 'u8[512]{0}', space=vmem, size = 0x400, scoped, tag = 'output window, operand 2, single buffered']
    #allocation9 [shape = 'u8[512]{0}', space=vmem, size = 0x400, scoped, tag = 'output window, operand 3, single buffered']
    #allocation10 [shape = 's32[1]{0}', space=sflag, size = 0x4, scoped, tag = 'scoped memory for tpu_custom_call.1']
    %14 = vsyncpa [#allocation3], 0
    %15 = vsyncpa [#allocation4], 0
    %16 = vsyncpa [#allocation7], 0
    %17 = vsyncpa [#allocation10], 0
    // Predicated region
    $region2: #{tpu_custom_call.1} parent=1 // pred_check
      _
    $region3: #{tpu_custom_call.1} parent=1 // pred_check_branch
      %19 = sbr.rel (0) target = $region5
    $region4: #{tpu_custom_call.1} parent=1 // pred_region
      %s21 = ssub.s32 128, 128
      %22 = vsyncadd [#allocation3], %s21
      %s24 = sshll.u32 [#allocation2], 4
      %s25 = int_to_ptr.vmem [resolvable:$true] %s24
      %27 = dma.hbm_to_vmem [thread:$0]  %s0, 128, %s25, [#allocation3]
    $region5: #{tpu_custom_call.1} parent=1 // pred_fallthru
      _
    // Predicated region
    $region6: #{tpu_custom_call.1} parent=1 // pred_check
      _
    $region7: #{tpu_custom_call.1} parent=1 // pred_check_branch
      %29 = sbr.rel (0) target = $region9
    $region8: #{tpu_custom_call.1} parent=1 // pred_region
      _
    $region9: #{tpu_custom_call.1} parent=1 // pred_fallthru
      _
    // Predicated region
    $region10: #{tpu_custom_call.1} parent=1 // pred_check
      _
    $region11: #{tpu_custom_call.1} parent=1 // pred_check_branch
      %31 = sbr.rel (0) target = $region13
    $region12: #{tpu_custom_call.1} parent=1 // pred_region
      _
    $region13: #{tpu_custom_call.1} parent=1 // pred_fallthru
      _
    // Predicated region
    $region14: #{tpu_custom_call.1} parent=1 // pred_check
      _
    $region15: #{tpu_custom_call.1} parent=1 // pred_check_branch
      %33 = sbr.rel (0) target = $region17
    $region16: #{tpu_custom_call.1} parent=1 // pred_region
      _
    $region17: #{tpu_custom_call.1} parent=1 // pred_fallthru
      _
    // Predicated region
    $region18: #{tpu_custom_call.1} parent=1 // pred_check
      _
    $region19: #{tpu_custom_call.1} parent=1 // pred_check_branch
      %35 = sbr.rel (0) target = $region21
    $region20: #{tpu_custom_call.1} parent=1 // pred_region
      _
    $region21: #{tpu_custom_call.1} parent=1 // pred_fallthru
      _
    // Predicated region
    $region22: #{tpu_custom_call.1} parent=1 // pred_check
      _
    $region23: #{tpu_custom_call.1} parent=1 // pred_check_branch
      %37 = sbr.rel (0) target = $region25
    $region24: #{tpu_custom_call.1} parent=1 // pred_region
      %38 = dma.done [#allocation3], 128
    $region25: #{tpu_custom_call.1} parent=1 // pred_fallthru
      _
    %v39 = vld [vmem:[#allocation2] sm:$0xff]
    %v40 = vrot.slane %v39, 4
    %v41 = vadd.f32 %v39, %v40
    %v42 = vrot.slane %v41, 2
    %v43 = vadd.f32 %v41, %v42
    %v44 = vrot.slane %v43, 1
    %v45 = vadd.f32 %v43, %v44
    %v46 = vmul.f32 %v39, %v39
    %v47 = vrot.slane %v46, 4
    %v48 = vadd.f32 %v46, %v47
    %v49 = vrot.slane %v48, 2
    %v50 = vadd.f32 %v48, %v49
    %v51 = vrot.slane %v50, 1
    %v52 = vadd.f32 %v50, %v51
    %v53 = vmul.f32 %v45, 0.125
    %v54 = vmul.f32 %v53, 8.0
    %v55 = vmul.f32 %v54, %v53
    %v56 = vsub.f32 %v52, %v55
    %v57 = vmul.f32 %v56, 0.14285715
    %v58 = vmax.f32 %v57, 0.0
    %v59 = vadd.f32 %v58, 1e-05
    %v60 = vrsqrt.pop %v59
    %v61 = vld [vmem:[%s1] sm:$0x1]
    %v62 = vmul.f32 %v61, 1.442695
    %v63 = vpow.pop %v62
    %v64 = vmul.f32 %v63, %v60
    %v65 = vld [vmem:[%s2] sm:$0x1]
    %v66 = vmul.f32 %v53, %v64
    %v67 = vsub.f32 %v65, %v66
    %v69 = vlaneseq
    %v70 = vshrl.u32 %v69, 7
    %v71 = vsub.s32 0, %v70
    %v72 = vrot.slane %v64, %v71
    %v74 = vmul.f32 %v39, %v72
    %v76 = vlaneseq
    %v77 = vshrl.u32 %v76, 7
    %v78 = vsub.s32 0, %v77
    %v79 = vrot.slane %v67, %v78
    %v81 = vadd.f32 %v74, %v79
    %82 = vst [vmem:[#allocation5] sm:$0xff] %v81
    %v83 = vld [vmem:[%s1] sm:$0x1]
    %v84 = vlog2.pop %v59
    %v85 = vmul.f32 %v84, 0.6931472
    %v86 = vmul.f32 %v85, 0.5
    %v87 = vsub.f32 %v83, %v86
    %88 = vst [vmem:[#allocation6] sm:$0x1] %v87
    %v89 = vld [vmem:[%s3] sm:$0x1]
    %v90 = vmul.f32 %v89, 0.9
    %v91 = vmul.f32 %v53, 0.1
    %v92 = vadd.f32 %v90, %v91
    %93 = vst [vmem:[#allocation8] sm:$0x1] %v92
    %v94 = vld [vmem:[%s4] sm:$0x1]
    %v95 = vmul.f32 %v94, 0.9
    %v96 = vmul.f32 %v58, 0.1
    %v97 = vadd.f32 %v95, %v96
    %98 = vst [vmem:[#allocation9] sm:$0x1] %v97
    // Predicated region
    $region26: #{tpu_custom_call.1} parent=1 // pred_check
      _
    $region27: #{tpu_custom_call.1} parent=1 // pred_check_branch
      %100 = sbr.rel (0) target = $region29
    $region28: #{tpu_custom_call.1} parent=1 // pred_region
      %s102 = ssub.s32 128, 128
      %103 = vsyncadd [#allocation4], %s102
      %s105 = sshll.u32 [#allocation5], 4
      %s106 = int_to_ptr.vmem [resolvable:$true] %s105
      %108 = dma.vmem_to_hbm [thread:$0]  %s106, 128, %s5, [#allocation4]
    $region29: #{tpu_custom_call.1} parent=1 // pred_fallthru
      _
    // Predicated region
    $region30: #{tpu_custom_call.1} parent=1 // pred_check
      _
    $region31: #{tpu_custom_call.1} parent=1 // pred_check_branch
      %110 = sbr.rel (0) target = $region33
    $region32: #{tpu_custom_call.1} parent=1 // pred_region
      %s112 = ssub.s32 16, 16
      %113 = vsyncadd [#allocation7], %s112
      %s115 = sshll.u32 [#allocation6], 4
      %s116 = int_to_ptr.vmem [resolvable:$true] %s115
      %118 = dma.vmem_to_hbm [thread:$0]  %s116, 16, %s6, [#allocation7]
    $region33: #{tpu_custom_call.1} parent=1 // pred_fallthru
      _
    // Predicated region
    $region34: #{tpu_custom_call.1} parent=1 // pred_check
      _
    $region35: #{tpu_custom_call.1} parent=1 // pred_check_branch
      %120 = sbr.rel (0) target = $region37
    $region36: #{tpu_custom_call.1} parent=1 // pred_region
      %s122 = ssub.s32 16, 16
      %123 = vsyncadd [#allocation7], %s122
      %s125 = sshll.u32 [#allocation8], 4
      %s126 = int_to_ptr.vmem [resolvable:$true] %s125
      %128 = dma.vmem_to_hbm [thread:$0]  %s126, 16, %s7, [#allocation7]
    $region37: #{tpu_custom_call.1} parent=1 // pred_fallthru
      _
    // Predicated region
    $region38: #{tpu_custom_call.1} parent=1 // pred_check
      _
    $region39: #{tpu_custom_call.1} parent=1 // pred_check_branch
      %130 = sbr.rel (0) target = $region41
    $region40: #{tpu_custom_call.1} parent=1 // pred_region
      %s132 = ssub.s32 16, 16
      %133 = vsyncadd [#allocation10], %s132
      %s135 = sshll.u32 [#allocation9], 4
      %s136 = int_to_ptr.vmem [resolvable:$true] %s135
      %138 = dma.vmem_to_hbm [thread:$0]  %s136, 16, %s8, [#allocation10]
    $region41: #{tpu_custom_call.1} parent=1 // pred_fallthru
      _
    // Predicated region
    $region42: #{tpu_custom_call.1} parent=1 // pred_check
      _
    $region43: #{tpu_custom_call.1} parent=1 // pred_check_branch
      %140 = sbr.rel (0) target = $region45
    $region44: #{tpu_custom_call.1} parent=1 // pred_region
      %141 = dma.done [#allocation4], 128
    $region45: #{tpu_custom_call.1} parent=1 // pred_fallthru
      _
    // Predicated region
    $region46: #{tpu_custom_call.1} parent=1 // pred_check
      _
    $region47: #{tpu_custom_call.1} parent=1 // pred_check_branch
      %143 = sbr.rel (0) target = $region49
    $region48: #{tpu_custom_call.1} parent=1 // pred_region
      %144 = dma.done [#allocation7], 16
    $region49: #{tpu_custom_call.1} parent=1 // pred_fallthru
      _
    // Predicated region
    $region50: #{tpu_custom_call.1} parent=1 // pred_check
      _
    $region51: #{tpu_custom_call.1} parent=1 // pred_check_branch
      %146 = sbr.rel (0) target = $region53
    $region52: #{tpu_custom_call.1} parent=1 // pred_region
      %147 = dma.done [#allocation7], 16
    $region53: #{tpu_custom_call.1} parent=1 // pred_fallthru
      _
    // Predicated region
    $region54: #{tpu_custom_call.1} parent=1 // pred_check
      _
    $region55: #{tpu_custom_call.1} parent=1 // pred_check_branch
      %149 = sbr.rel (0) target = $region57
    $region56: #{tpu_custom_call.1} parent=1 // pred_region
      %150 = dma.done [#allocation10], 16
    $region57: #{tpu_custom_call.1} parent=1 // pred_fallthru
      _
    %151 = vsyncpa [#allocation3], 1
    %152 = vsyncpa [#allocation4], 1
    %153 = vsyncpa [#allocation7], 1
    %154 = vsyncpa [#allocation10], 1

</llo_original>
